<compile_context>
chip_gen: v6e
topology: v6e:2x2x1
jax: 0.10.0
libtpu: 0.0.40
codegen_flags: <defaults>
</compile_context>

<pallas_src>
import jax
import jax.numpy as jnp
from jax.experimental import pallas as pl
from jax.experimental.pallas import tpu as pltpu

F_IN = 26          # true input width
F_OUT = 2          # true output width
HIDDEN_PAD = 128   # 100 -> 128 lanes: aligned MXU K/N, full-lane VPU bias+ReLU
OUT_PAD = 8        # 2 -> 8 lanes: contiguous narrow output block (16x less
                   # HBM writeback than 128-lane padding); padded cols are 0.


def _round_up(n, m):
    return ((n + m - 1) // m) * m


# ---------------------------------------------------------------------------
# Kernel: one batch tile per grid step, all three layers fused in VMEM.
# ---------------------------------------------------------------------------
def mlp_kernel(x_ref, w1_ref, b1_ref, w2_ref, b2_ref, w3_ref, b3_ref, o_ref):
    wdt = w1_ref.dtype
    x = x_ref[...].astype(wdt)          # in-kernel cast (VPU); no extra HBM pass
    # lin1 + relu1 (drop1 = identity in eval mode).  MXU accumulates in f32;
    # bias add + ReLU stay f32 on the VPU.
    h = jnp.dot(x, w1_ref[...], preferred_element_type=jnp.float32)
    h = jnp.maximum(h + b1_ref[...], 0.0)
    # lin2 + relu2
    h = jnp.dot(h.astype(wdt), w2_ref[...], preferred_element_type=jnp.float32)
    h = jnp.maximum(h + b2_ref[...], 0.0)
    # lin3 -> narrow (bm, OUT_PAD) tile: writeback bytes ~ true output width
    out = jnp.dot(h.astype(wdt), w3_ref[...], preferred_element_type=jnp.float32)
    o_ref[...] = (out + b3_ref[...]).astype(o_ref.dtype)


# ---------------------------------------------------------------------------
# One-time parameter preprocessing (hoisted out of the per-call path).
# ---------------------------------------------------------------------------
def prepare_params(w1, b1, w2, b2, w3, b3, *, compute_dtype=jnp.float32):
    """w_i: (in, out) = transpose of PyTorch nn.Linear.weight; b_i: (out,) or (1,out).
    Pads hidden dims to 128 lanes / output to OUT_PAD lanes and casts weights to
    compute_dtype (biases stay f32 for the VPU epilogue)."""
    def pad2(a, rows, cols):
        a = jnp.asarray(a)
        return jnp.pad(a, ((0, rows - a.shape[0]), (0, cols - a.shape[1])))

    b1 = jnp.asarray(b1).reshape(1, -1)
    b2 = jnp.asarray(b2).reshape(1, -1)
    b3 = jnp.asarray(b3).reshape(1, -1)
    w1p = pad2(w1, F_IN, HIDDEN_PAD).astype(compute_dtype)        # (26, 128)
    w2p = pad2(w2, HIDDEN_PAD, HIDDEN_PAD).astype(compute_dtype)  # (128, 128)
    w3p = pad2(w3, HIDDEN_PAD, OUT_PAD).astype(compute_dtype)     # (128, 8)
    b1p = pad2(b1, 1, HIDDEN_PAD).astype(jnp.float32)             # (1, 128)
    b2p = pad2(b2, 1, HIDDEN_PAD).astype(jnp.float32)             # (1, 128)
    b3p = pad2(b3, 1, OUT_PAD).astype(jnp.float32)                # (1, 8)
    return (w1p, b1p, w2p, b2p, w3p, b3p)


# ---------------------------------------------------------------------------
# Forward pass.
# ---------------------------------------------------------------------------
def neuralnet9_forward(x, params, *, bm=None, out_dtype=jnp.float32):
    """x: (B, 26). params: output of prepare_params(). Returns (B, 2) out_dtype."""
    w1p, b1p, w2p, b2p, w3p, b3p = params
    B = x.shape[0]

    # Batch-tile heuristic: large tiles (<= ~2048 rows, a few MiB of VMEM) to
    # amortize the ~0.35us per-grid-step overhead, and an even number (>=2) of
    # equal steps so a v7x megacore can split the batch axis across its 2 TCs.
    row_align = 16 if w1p.dtype == jnp.bfloat16 else 8
    if bm is None:
        if B <= 2 * row_align:
            bm = _round_up(max(B, 1), row_align)          # too small to split
        else:
            n_steps = max(2, pl.cdiv(B, 2048))
            if n_steps % 2:
                n_steps += 1                              # even step count
            bm = _round_up(pl.cdiv(B, n_steps), row_align)
    bm = _round_up(bm, row_align)

    # No host-side padding of x: cdiv grid, ragged boundary block handled by
    # masked boundary reads/writes (no cross-row reduction -> safe).
    grid = (pl.cdiv(B, bm),)
    const = lambda i: (0, 0)   # weights/biases: grid-invariant full blocks (~100KB)

    out_padded = pl.pallas_call(
        mlp_kernel,
        out_shape=jax.ShapeDtypeStruct((B, OUT_PAD), out_dtype),
        grid=grid,
        in_specs=[
            pl.BlockSpec((bm, F_IN), lambda i: (i, 0)),    # x tile (bm, 26)
            pl.BlockSpec(w1p.shape, const),                # W1 (26, 128)
            pl.BlockSpec(b1p.shape, const),                # b1 (1, 128)
            pl.BlockSpec(w2p.shape, const),                # W2 (128, 128)
            pl.BlockSpec(b2p.shape, const),                # b2 (1, 128)
            pl.BlockSpec(w3p.shape, const),                # W3 (128, 8)
            pl.BlockSpec(b3p.shape, const),                # b3 (1, 8)
        ],
        out_specs=pl.BlockSpec((bm, OUT_PAD), lambda i: (i, 0)),
        # TODO(synk): on v7x, sweep pltpu.CORE_PARALLEL on the batch axis if a
        # trace shows one TensorCore idle; "parallel" is the safe default on
        # single-TC chips (v5e/v6e).
        compiler_params=pltpu.CompilerParams(
            dimension_semantics=("parallel",)),
    )(x, w1p, b1p, w2p, b2p, w3p, b3p)

    return out_padded[:, :F_OUT]


# ---------------------------------------------------------------------------
# Reference + init helpers.
# ---------------------------------------------------------------------------
def init_linear(key, fan_in, fan_out):
    """Deterministic init mimicking PyTorch nn.Linear (uniform +/- 1/sqrt(fan_in))."""
    kw, kb = jax.random.split(key)
    bound = 1.0 / jnp.sqrt(fan_in)
    w = jax.random.uniform(kw, (fan_in, fan_out), jnp.float32, -bound, bound)
    b = jax.random.uniform(kb, (1, fan_out), jnp.float32, -bound, bound)
    return w, b


def reference(x, w1, b1, w2, b2, w3, b3):
    h = jnp.maximum(x @ w1 + b1, 0.0)
    h = jnp.maximum(h @ w2 + b2, 0.0)
    return h @ w3 + b3


if __name__ == "__main__":
    key = jax.random.PRNGKey(0)
    k_x, k1, k2, k3 = jax.random.split(key, 4)

    w1, b1 = init_linear(k1, 26, 100)
    w2, b2 = init_linear(k2, 100, 100)
    w3, b3 = init_linear(k3, 100, 2)

    # One-time parameter preprocessing (hoisted out of the forward path).
    params_f32 = prepare_params(w1, b1, w2, b2, w3, b3)
    params_bf16 = prepare_params(w1, b1, w2, b2, w3, b3,
                                 compute_dtype=jnp.bfloat16)

    forward = jax.jit(neuralnet9_forward, static_argnames=("bm", "out_dtype"))

    # Small batch: whole batch in a single block.
    B = 8
    x = jax.random.normal(k_x, (B, 26), jnp.float32)
    out = jax.block_until_ready(forward(x, params_f32))
    ref = reference(x, w1, b1, w2, b2, w3, b3)
    assert out.shape == (B, 2)
    assert jnp.allclose(out, ref, atol=1e-4, rtol=1e-4)

    # Ragged batch with an explicit small tile: exercises the cdiv grid with a
    # masked boundary block and a multi-step "parallel" grid.
    B2 = 200
    x2 = jax.random.normal(k_x, (B2, 26), jnp.float32)
    out2 = jax.block_until_ready(forward(x2, params_f32, bm=64))
    ref2 = reference(x2, w1, b1, w2, b2, w3, b3)
    assert out2.shape == (B2, 2)
    assert jnp.allclose(out2, ref2, atol=1e-4, rtol=1e-4)

    # bf16 weights (x stays f32 in HBM, cast in-kernel; f32 accumulation/epilogue).
    out3 = jax.block_until_ready(forward(x2, params_bf16))
    assert out3.shape == (B2, 2)
    assert jnp.allclose(out3, ref2, atol=5e-2, rtol=5e-2)

    print("KERNEL_OK")
</pallas_src>

<mosaic_0001>
module attributes {stable_mosaic.version = 11 : i64} {
  func.func @mlp_kernel(%arg0: i32, %arg1: memref<8x26xf32, #tpu.memory_space<vmem>>, %arg2: memref<26x128xf32, #tpu.memory_space<vmem>>, %arg3: memref<1x128xf32, #tpu.memory_space<vmem>>, %arg4: memref<128x128xf32, #tpu.memory_space<vmem>>, %arg5: memref<1x128xf32, #tpu.memory_space<vmem>>, %arg6: memref<128x8xf32, #tpu.memory_space<vmem>>, %arg7: memref<1x8xf32, #tpu.memory_space<vmem>>, %arg8: memref<8x8xf32, #tpu.memory_space<vmem>>) attributes {dimension_semantics = [#tpu.dimension_semantics<parallel>], iteration_bounds = array<i64: 1>, scalar_prefetch = 0 : i64, scratch_operands = 0 : i64, tpu.core_type = #tpu.core_type<tc>, window_params = [{transform_indices = @transform_0, window_bounds = array<i64: 8, 26>}, {pipeline_mode = #tpu.pipeline_mode<synchronous>, transform_indices = @transform_1, window_bounds = array<i64: 26, 128>}, {pipeline_mode = #tpu.pipeline_mode<synchronous>, transform_indices = @transform_2, window_bounds = array<i64: 1, 128>}, {pipeline_mode = #tpu.pipeline_mode<synchronous>, transform_indices = @transform_3, window_bounds = array<i64: 128, 128>}, {pipeline_mode = #tpu.pipeline_mode<synchronous>, transform_indices = @transform_4, window_bounds = array<i64: 1, 128>}, {pipeline_mode = #tpu.pipeline_mode<synchronous>, transform_indices = @transform_5, window_bounds = array<i64: 128, 8>}, {pipeline_mode = #tpu.pipeline_mode<synchronous>, transform_indices = @transform_6, window_bounds = array<i64: 1, 8>}, {transform_indices = @transform_7, window_bounds = array<i64: 8, 8>}]} {
    %c0 = arith.constant 0 : index
    %c0_0 = arith.constant 0 : index
    %0 = vector.load %arg1[%c0, %c0_0] : memref<8x26xf32, #tpu.memory_space<vmem>>, vector<8x26xf32>
    %c0_1 = arith.constant 0 : index
    %c0_2 = arith.constant 0 : index
    %1 = vector.load %arg2[%c0_1, %c0_2] : memref<26x128xf32, #tpu.memory_space<vmem>>, vector<26x128xf32>
    %cst = arith.constant dense<0.000000e+00> : vector<8x128xf32>
    %2 = tpu.matmul %0, %1, %cst {dimension_numbers = #tpu.dot_dimension_numbers<[1], [0], [0], [1], [0, 0, 1, 1], [], []>} : vector<8x26xf32>, vector<26x128xf32>, vector<8x128xf32> -> vector<8x128xf32>
    %c0_3 = arith.constant 0 : index
    %c0_4 = arith.constant 0 : index
    %3 = vector.load %arg3[%c0_3, %c0_4] : memref<1x128xf32, #tpu.memory_space<vmem>>, vector<1x128xf32>
    %4 = vector.broadcast %3 : vector<1x128xf32> to vector<8x128xf32>
    %5 = arith.addf %2, %4 : vector<8x128xf32>
    %cst_5 = arith.constant 0.000000e+00 : f32
    %6 = vector.broadcast %cst_5 : f32 to vector<8x128xf32>
    %7 = arith.maximumf %5, %6 : vector<8x128xf32>
    %c0_6 = arith.constant 0 : index
    %c0_7 = arith.constant 0 : index
    %8 = vector.load %arg4[%c0_6, %c0_7] : memref<128x128xf32, #tpu.memory_space<vmem>>, vector<128x128xf32>
    %cst_8 = arith.constant dense<0.000000e+00> : vector<8x128xf32>
    %9 = tpu.matmul %7, %8, %cst_8 {dimension_numbers = #tpu.dot_dimension_numbers<[1], [0], [0], [1], [0, 0, 1, 1], [], []>} : vector<8x128xf32>, vector<128x128xf32>, vector<8x128xf32> -> vector<8x128xf32>
    %c0_9 = arith.constant 0 : index
    %c0_10 = arith.constant 0 : index
    %10 = vector.load %arg5[%c0_9, %c0_10] : memref<1x128xf32, #tpu.memory_space<vmem>>, vector<1x128xf32>
    %11 = vector.broadcast %10 : vector<1x128xf32> to vector<8x128xf32>
    %12 = arith.addf %9, %11 : vector<8x128xf32>
    %cst_11 = arith.constant 0.000000e+00 : f32
    %13 = vector.broadcast %cst_11 : f32 to vector<8x128xf32>
    %14 = arith.maximumf %12, %13 : vector<8x128xf32>
    %c0_12 = arith.constant 0 : index
    %c0_13 = arith.constant 0 : index
    %15 = vector.load %arg6[%c0_12, %c0_13] : memref<128x8xf32, #tpu.memory_space<vmem>>, vector<128x8xf32>
    %cst_14 = arith.constant dense<0.000000e+00> : vector<8x8xf32>
    %16 = tpu.matmul %14, %15, %cst_14 {dimension_numbers = #tpu.dot_dimension_numbers<[1], [0], [0], [1], [0, 0, 1, 1], [], []>} : vector<8x128xf32>, vector<128x8xf32>, vector<8x8xf32> -> vector<8x8xf32>
    %c0_15 = arith.constant 0 : index
    %c0_16 = arith.constant 0 : index
    %17 = vector.load %arg7[%c0_15, %c0_16] : memref<1x8xf32, #tpu.memory_space<vmem>>, vector<1x8xf32>
    %18 = vector.broadcast %17 : vector<1x8xf32> to vector<8x8xf32>
    %19 = arith.addf %16, %18 : vector<8x8xf32>
    %c0_17 = arith.constant 0 : index
    %c0_18 = arith.constant 0 : index
    %20 = vector.load %arg8[%c0_17, %c0_18] : memref<8x8xf32, #tpu.memory_space<vmem>>, vector<8x8xf32>
    tpu.vector_store %arg8[%c0_17, %c0_18], %19 {strides = array<i32>} : memref<8x8xf32, #tpu.memory_space<vmem>>, vector<8x8xf32>,
    return
  }
  func.func @transform_0(%arg0: i32) -> (i32, i32) {
    %c0_i32 = arith.constant 0 : i32
    %c0_i32_0 = arith.constant 0 : i32
    return %arg0, %c0_i32 : i32, i32
  }
  func.func @transform_1(%arg0: i32) -> (i32, i32) {
    %c0_i32 = arith.constant 0 : i32
    %c0_i32_0 = arith.constant 0 : i32
    %c0_i32_1 = arith.constant 0 : i32
    return %c0_i32, %c0_i32_0 : i32, i32
  }
  func.func @transform_2(%arg0: i32) -> (i32, i32) {
    %c0_i32 = arith.constant 0 : i32
    %c0_i32_0 = arith.constant 0 : i32
    %c0_i32_1 = arith.constant 0 : i32
    return %c0_i32, %c0_i32_0 : i32, i32
  }
  func.func @transform_3(%arg0: i32) -> (i32, i32) {
    %c0_i32 = arith.constant 0 : i32
    %c0_i32_0 = arith.constant 0 : i32
    %c0_i32_1 = arith.constant 0 : i32
    return %c0_i32, %c0_i32_0 : i32, i32
  }
  func.func @transform_4(%arg0: i32) -> (i32, i32) {
    %c0_i32 = arith.constant 0 : i32
    %c0_i32_0 = arith.constant 0 : i32
    %c0_i32_1 = arith.constant 0 : i32
    return %c0_i32, %c0_i32_0 : i32, i32
  }
  func.func @transform_5(%arg0: i32) -> (i32, i32) {
    %c0_i32 = arith.constant 0 : i32
    %c0_i32_0 = arith.constant 0 : i32
    %c0_i32_1 = arith.constant 0 : i32
    return %c0_i32, %c0_i32_0 : i32, i32
  }
  func.func @transform_6(%arg0: i32) -> (i32, i32) {
    %c0_i32 = arith.constant 0 : i32
    %c0_i32_0 = arith.constant 0 : i32
    %c0_i32_1 = arith.constant 0 : i32
    return %c0_i32, %c0_i32_0 : i32, i32
  }
  func.func @transform_7(%arg0: i32) -> (i32, i32) {
    %c0_i32 = arith.constant 0 : i32
    %c0_i32_0 = arith.constant 0 : i32
    return %arg0, %c0_i32 : i32, i32
  }
}

</mosaic_0001>

<llo_original>
// kernel: neuralnet9_forward.1
$region0: #{neuralnet9_forward.1}
  #allocation0 [shape = 'u32[]', space=smem, size = 0x4, offset = 0x4, fixed_abs, tag = 'smem constant byte address 0x4 - core index']
  #allocation1 [shape = 'u32[144,128]{1,0:T(1,128)}', space=vmem, size = 0x12000, scoped, tag = 'internal scratch']
  %s0 = inlined_call_operand.vmem [shape: f32[8,26], index: 0, kind: input, shape index: {}]
  %s1 = inlined_call_operand.hbm [shape: f32[26,128], index: 1, kind: input, shape index: {}]
  %s2 = inlined_call_operand.vmem [shape: f32[1,128], index: 2, kind: input, shape index: {}]
  %s3 = inlined_call_operand.vmem [shape: f32[128,128], index: 3, kind: input, shape index: {}]
  %s4 = inlined_call_operand.hbm [shape: f32[1,128], index: 4, kind: input, shape index: {}]
  %s5 = inlined_call_operand.vmem [shape: f32[128,8], index: 5, kind: input, shape index: {}]
  %s6 = inlined_call_operand.vmem [shape: f32[1,8], index: 6, kind: input, shape index: {}]
  %s7 = inlined_call_operand.vmem [shape: f32[8,8], index: 7, kind: output, shape index: {}]
  %s8 = sld [smem:[#allocation0]]
  $region46: #{neuralnet9_forward.1} parent=0
    _
  %s10 = ssub.s32 1, %s8
  %s11 = scalar_select 0, %s10, %s8
  $region1: #{neuralnet9_forward.1} parent=0
    #allocation2 [shape = 'u8[16384]{0}', space=vmem, size = 0x4000, scoped, tag = 'input window, operand 1, single buffered']
    #allocation3 [shape = 's32[1]{0}', space=sflag, size = 0x4, scoped, tag = 'scoped memory for neuralnet9_forward.1']
    #allocation4 [shape = 'u8[512]{0}', space=vmem, size = 0x400, scoped, tag = 'input window, operand 4, single buffered']
    #allocation5 [shape = 's32[1]{0}', space=sflag, size = 0x4, scoped, tag = 'scoped memory for neuralnet9_forward.1']
    %12 = vsyncpa [#allocation3], 0
    %13 = vsyncpa [#allocation5], 0
    // Predicated region
    $region2: #{neuralnet9_forward.1} parent=1 // pred_check
      _
    $region3: #{neuralnet9_forward.1} parent=1 // pred_check_branch
      %15 = sbr.rel (0) target = $region5
    $region4: #{neuralnet9_forward.1} parent=1 // pred_region
      _
    $region5: #{neuralnet9_forward.1} parent=1 // pred_fallthru
      _
    // Predicated region
    $region6: #{neuralnet9_forward.1} parent=1 // pred_check
      _
    $region7: #{neuralnet9_forward.1} parent=1 // pred_check_branch
      %17 = sbr.rel (0) target = $region9
    $region8: #{neuralnet9_forward.1} parent=1 // pred_region
      %s19 = ssub.s32 512, 512
      %20 = vsyncadd [#allocation3], %s19
      %s21 = sshll.u32 [#allocation2], 4
      %s22 = int_to_ptr.vmem [resolvable:$true] %s21
      %27 = dma.hbm_to_vmem [thread:$0]  %s1, 512, %s22, [#allocation3], 128, 128, 8
    $region9: #{neuralnet9_forward.1} parent=1 // pred_fallthru
      _
    // Predicated region
    $region10: #{neuralnet9_forward.1} parent=1 // pred_check
      _
    $region11: #{neuralnet9_forward.1} parent=1 // pred_check_branch
      %29 = sbr.rel (0) target = $region13
    $region12: #{neuralnet9_forward.1} parent=1 // pred_region
      _
    $region13: #{neuralnet9_forward.1} parent=1 // pred_fallthru
      _
    // Predicated region
    $region14: #{neuralnet9_forward.1} parent=1 // pred_check
      _
    $region15: #{neuralnet9_forward.1} parent=1 // pred_check_branch
      %31 = sbr.rel (0) target = $region17
    $region16: #{neuralnet9_forward.1} parent=1 // pred_region
      _
    $region17: #{neuralnet9_forward.1} parent=1 // pred_fallthru
      _
    // Predicated region
    $region18: #{neuralnet9_forward.1} parent=1 // pred_check
      _
    $region19: #{neuralnet9_forward.1} parent=1 // pred_check_branch
      %33 = sbr.rel (0) target = $region21
    $region20: #{neuralnet9_forward.1} parent=1 // pred_region
      %s35 = ssub.s32 16, 16
      %36 = vsyncadd [#allocation5], %s35
      %s38 = sshll.u32 [#allocation4], 4
      %s39 = int_to_ptr.vmem [resolvable:$true] %s38
      %41 = dma.hbm_to_vmem [thread:$0]  %s4, 16, %s39, [#allocation5]
    $region21: #{neuralnet9_forward.1} parent=1 // pred_fallthru
      _
    // Predicated region
    $region22: #{neuralnet9_forward.1} parent=1 // pred_check
      _
    $region23: #{neuralnet9_forward.1} parent=1 // pred_check_branch
      %43 = sbr.rel (0) target = $region25
    $region24: #{neuralnet9_forward.1} parent=1 // pred_region
      _
    $region25: #{neuralnet9_forward.1} parent=1 // pred_fallthru
      _
    // Predicated region
    $region26: #{neuralnet9_forward.1} parent=1 // pred_check
      _
    $region27: #{neuralnet9_forward.1} parent=1 // pred_check_branch
      %45 = sbr.rel (0) target = $region29
    $region28: #{neuralnet9_forward.1} parent=1 // pred_region
      _
    $region29: #{neuralnet9_forward.1} parent=1 // pred_fallthru
      _
    // Predicated region
    $region30: #{neuralnet9_forward.1} parent=1 // pred_check
      _
    $region31: #{neuralnet9_forward.1} parent=1 // pred_check_branch
      %47 = sbr.rel (0) target = $region33
    $region32: #{neuralnet9_forward.1} parent=1 // pred_region
      %48 = dma.done [#allocation3], 512
    $region33: #{neuralnet9_forward.1} parent=1 // pred_fallthru
      _
    // Predicated region
    $region34: #{neuralnet9_forward.1} parent=1 // pred_check
      _
    $region35: #{neuralnet9_forward.1} parent=1 // pred_check_branch
      %50 = sbr.rel (0) target = $region37
    $region36: #{neuralnet9_forward.1} parent=1 // pred_region
      %51 = dma.done [#allocation5], 16
    $region37: #{neuralnet9_forward.1} parent=1 // pred_fallthru
      _
    %v52 = vld [vmem:[%s0] sm:$0xff]
    %v53 = vld [vmem:[#allocation2] sm:$0xff]
    %v54 = vld [vmem:[#allocation2 + $0x8] sm:$0xff]
    %v55 = vld [vmem:[#allocation2 + $0x10] sm:$0xff]
    %v56 = vld [vmem:[#allocation2 + $0x18] sm:$0x3]
    %v57 = vld [vmem:[%s2] sm:$0x1]
    %v59 = vlaneseq
    %v60 = vshrl.u32 %v59, 7
    %v61 = vsub.s32 0, %v60
    %v62 = vrot.slane %v57, %v61
    %vm64 = vcmask 211968
    %v66 = vsel %vm64, %v52, 0
    %vm68 = vcmask 1041408
    %v70 = vsel %vm68, %v56, 0
    %72 = vmatprep.subr.mxu0 0.0
    %73 = vmatpush1.msra.mxu0 0.0
    %74 = vmatprep.subr.mxu0 0.0
    %75 = vmatpush1.msra.mxu0 0.0
    %76 = vmatprep.subr.mxu0 0.0
    %77 = vmatpush1.msra.mxu0 0.0
    %78 = vmatprep.subr.mxu0 0.0
    %79 = vmatpush1.msra.mxu0 0.0
    %80 = vmatprep.subr.mxu0 0.0
    %81 = vmatpush1.msra.mxu0 0.0
    %82 = vmatprep.subr.mxu0 0.0
    %83 = vmatpush1.msra.mxu0 0.0
    %84 = vmatprep.subr.mxu0 0.0
    %85 = vmatpush1.msra.mxu0 0.0
    %86 = vmatprep.subr.mxu0 0.0
    %87 = vmatpush1.msra.mxu0 0.0
    %88 = vmatprep.subr.mxu0 0.0
    %89 = vmatpush1.msra.mxu0 0.0
    %90 = vmatprep.subr.mxu0 0.0
    %91 = vmatpush1.msra.mxu0 0.0
    %92 = vmatprep.subr.mxu0 0.0
    %93 = vmatpush1.msra.mxu0 0.0
    %94 = vmatprep.subr.mxu0 0.0
    %95 = vmatpush1.msra.mxu0 0.0
    %96 = vmatprep.subr.mxu0 0.0
    %97 = vmatpush1.msra.mxu0 %v70
    %98 = vmatprep.subr.mxu0 0.0
    %99 = vmatpush1.msra.mxu0 %v55
    %100 = vmatprep.subr.mxu0 0.0
    %101 = vmatpush1.msra.mxu0 %v54
    %102 = vmatprep.subr.mxu0 0.0
    %103 = vmatpush1.msra.mxu0 %v53
    %104 = vmatprep.subr.mxu0 0.0
    %105 = vmatpush2.msra.mxu0 0.0
    %106 = vmatprep.subr.mxu0 0.0
    %107 = vmatpush2.msra.mxu0 0.0
    %108 = vmatprep.subr.mxu0 0.0
    %109 = vmatpush2.msra.mxu0 0.0
    %110 = vmatprep.subr.mxu0 0.0
    %111 = vmatpush2.msra.mxu0 0.0
    %112 = vmatprep.subr.mxu0 0.0
    %113 = vmatpush2.msra.mxu0 0.0
    %114 = vmatprep.subr.mxu0 0.0
    %115 = vmatpush2.msra.mxu0 0.0
    %116 = vmatprep.subr.mxu0 0.0
    %117 = vmatpush2.msra.mxu0 0.0
    %118 = vmatprep.subr.mxu0 0.0
    %119 = vmatpush2.msra.mxu0 0.0
    %120 = vmatprep.subr.mxu0 0.0
    %121 = vmatpush2.msra.mxu0 0.0
    %122 = vmatprep.subr.mxu0 0.0
    %123 = vmatpush2.msra.mxu0 0.0
    %124 = vmatprep.subr.mxu0 0.0
    %125 = vmatpush2.msra.mxu0 0.0
    %126 = vmatprep.subr.mxu0 0.0
    %127 = vmatpush2.msra.mxu0 0.0
    %128 = vmatprep.subr.mxu0 0.0
    %129 = vmatpush2.msra.mxu0 0.0
    %130 = vmatprep.subr.mxu0 0.0
    %131 = vmatpush2.msra.mxu0 0.0
    %132 = vmatprep.subr.mxu0 0.0
    %133 = vmatpush2.msra.mxu0 0.0
    %134 = vmatprep.subr.mxu0 0.0
    %135 = vmatpush2.msra.mxu0 0.0
    %136 = vmatprep.mubr.f32.mxu0 0.0
    %137 = vmatmul.mubr.f32.gmra.mxu0 %v66
    %v138 = vpop.f32.mrf.mxu0
    %v139 = vadd.f32 %v62, %v138
    %v140 = vpop.f32.mrf.mxu0
    %141 = vdwg.mxu0
    %v142 = vmax.f32 %v139, 0.0
    %v143 = vld [vmem:[%s3] sm:$0xff]
    %v144 = vld [vmem:[%s3 + $0x8] sm:$0xff]
    %v145 = vld [vmem:[%s3 + $0x10] sm:$0xff]
    %v146 = vld [vmem:[%s3 + $0x18] sm:$0xff]
    %v147 = vld [vmem:[%s3 + $0x20] sm:$0xff]
    %v148 = vld [vmem:[%s3 + $0x28] sm:$0xff]
    %v149 = vld [vmem:[%s3 + $0x30] sm:$0xff]
    %v150 = vld [vmem:[%s3 + $0x38] sm:$0xff]
    %v151 = vld [vmem:[%s3 + $0x40] sm:$0xff]
    %v152 = vld [vmem:[%s3 + $0x48] sm:$0xff]
    %v153 = vld [vmem:[%s3 + $0x50] sm:$0xff]
    %v154 = vld [vmem:[%s3 + $0x58] sm:$0xff]
    %v155 = vld [vmem:[%s3 + $0x60] sm:$0xff]
    %v156 = vld [vmem:[%s3 + $0x68] sm:$0xff]
    %v157 = vld [vmem:[%s3 + $0x70] sm:$0xff]
    %v158 = vld [vmem:[%s3 + $0x78] sm:$0xff]
    %v159 = vld [vmem:[#allocation4] sm:$0x1]
    %v161 = vlaneseq
    %v162 = vshrl.u32 %v161, 7
    %v163 = vsub.s32 0, %v162
    %v164 = vrot.slane %v159, %v163
    %166 = vmatprep.subr.mxu0 0.0
    %167 = vmatpush1.msra.mxu0 %v158
    %168 = vmatprep.subr.mxu0 0.0
    %169 = vmatpush1.msra.mxu0 %v157
    %170 = vmatprep.subr.mxu0 0.0
    %171 = vmatpush1.msra.mxu0 %v156
    %172 = vmatprep.subr.mxu0 0.0
    %173 = vmatpush1.msra.mxu0 %v155
    %174 = vmatprep.subr.mxu0 0.0
    %175 = vmatpush1.msra.mxu0 %v154
    %176 = vmatprep.subr.mxu0 0.0
    %177 = vmatpush1.msra.mxu0 %v153
    %178 = vmatprep.subr.mxu0 0.0
    %179 = vmatpush1.msra.mxu0 %v152
    %180 = vmatprep.subr.mxu0 0.0
    %181 = vmatpush1.msra.mxu0 %v151
    %182 = vmatprep.subr.mxu0 0.0
    %183 = vmatpush1.msra.mxu0 %v150
    %184 = vmatprep.subr.mxu0 0.0
    %185 = vmatpush1.msra.mxu0 %v149
    %186 = vmatprep.subr.mxu0 0.0
    %187 = vmatpush1.msra.mxu0 %v148
    %188 = vmatprep.subr.mxu0 0.0
    %189 = vmatpush1.msra.mxu0 %v147
    %190 = vmatprep.subr.mxu0 0.0
    %191 = vmatpush1.msra.mxu0 %v146
    %192 = vmatprep.subr.mxu0 0.0
    %193 = vmatpush1.msra.mxu0 %v145
    %194 = vmatprep.subr.mxu0 0.0
    %195 = vmatpush1.msra.mxu0 %v144
    %196 = vmatprep.subr.mxu0 0.0
    %197 = vmatpush1.msra.mxu0 %v143
    %198 = vmatprep.subr.mxu0 0.0
    %199 = vmatpush2.msra.mxu0 0.0
    %200 = vmatprep.subr.mxu0 0.0
    %201 = vmatpush2.msra.mxu0 0.0
    %202 = vmatprep.subr.mxu0 0.0
    %203 = vmatpush2.msra.mxu0 0.0
    %204 = vmatprep.subr.mxu0 0.0
    %205 = vmatpush2.msra.mxu0 0.0
    %206 = vmatprep.subr.mxu0 0.0
    %207 = vmatpush2.msra.mxu0 0.0
    %208 = vmatprep.subr.mxu0 0.0
    %209 = vmatpush2.msra.mxu0 0.0
    %210 = vmatprep.subr.mxu0 0.0
    %211 = vmatpush2.msra.mxu0 0.0
    %212 = vmatprep.subr.mxu0 0.0
    %213 = vmatpush2.msra.mxu0 0.0
    %214 = vmatprep.subr.mxu0 0.0
    %215 = vmatpush2.msra.mxu0 0.0
    %216 = vmatprep.subr.mxu0 0.0
    %217 = vmatpush2.msra.mxu0 0.0
    %218 = vmatprep.subr.mxu0 0.0
    %219 = vmatpush2.msra.mxu0 0.0
    %220 = vmatprep.subr.mxu0 0.0
    %221 = vmatpush2.msra.mxu0 0.0
    %222 = vmatprep.subr.mxu0 0.0
    %223 = vmatpush2.msra.mxu0 0.0
    %224 = vmatprep.subr.mxu0 0.0
    %225 = vmatpush2.msra.mxu0 0.0
    %226 = vmatprep.subr.mxu0 0.0
    %227 = vmatpush2.msra.mxu0 0.0
    %228 = vmatprep.subr.mxu0 0.0
    %229 = vmatpush2.msra.mxu0 0.0
    %230 = vmatprep.mubr.f32.mxu0 0.0
    %231 = vmatmul.mubr.f32.gmra.mxu0 %v142
    %v232 = vpop.f32.mrf.mxu0
    %v233 = vadd.f32 %v164, %v232
    %v234 = vpop.f32.mrf.mxu0
    %235 = vdwg.mxu0
    %v236 = vmax.f32 %v233, 0.0
    %v237 = vld [vmem:[%s5] sm:$0xff]
    %v238 = vld [vmem:[%s5 + $0x8] sm:$0xff]
    %v239 = vld [vmem:[%s5 + $0x10] sm:$0xff]
    %v240 = vld [vmem:[%s5 + $0x18] sm:$0xff]
    %v241 = vld [vmem:[%s5 + $0x20] sm:$0xff]
    %v242 = vld [vmem:[%s5 + $0x28] sm:$0xff]
    %v243 = vld [vmem:[%s5 + $0x30] sm:$0xff]
    %v244 = vld [vmem:[%s5 + $0x38] sm:$0xff]
    %v245 = vld [vmem:[%s5 + $0x40] sm:$0xff]
    %v246 = vld [vmem:[%s5 + $0x48] sm:$0xff]
    %v247 = vld [vmem:[%s5 + $0x50] sm:$0xff]
    %v248 = vld [vmem:[%s5 + $0x58] sm:$0xff]
    %v249 = vld [vmem:[%s5 + $0x60] sm:$0xff]
    %v250 = vld [vmem:[%s5 + $0x68] sm:$0xff]
    %v251 = vld [vmem:[%s5 + $0x70] sm:$0xff]
    %v252 = vld [vmem:[%s5 + $0x78] sm:$0xff]
    %v253 = vld [vmem:[%s6] sm:$0x1]
    %v255 = vlaneseq
    %v256 = vshrl.u32 %v255, 7
    %v257 = vsub.s32 0, %v256
    %v258 = vrot.slane %v253, %v257
    %260 = vmatprep.subr.mxu0 0.0
    %261 = vmatpush1.msra.mxu0 %v252
    %262 = vmatprep.subr.mxu0 0.0
    %263 = vmatpush1.msra.mxu0 %v251
    %264 = vmatprep.subr.mxu0 0.0
    %265 = vmatpush1.msra.mxu0 %v250
    %266 = vmatprep.subr.mxu0 0.0
    %267 = vmatpush1.msra.mxu0 %v249
    %268 = vmatprep.subr.mxu0 0.0
    %269 = vmatpush1.msra.mxu0 %v248
    %270 = vmatprep.subr.mxu0 0.0
    %271 = vmatpush1.msra.mxu0 %v247
    %272 = vmatprep.subr.mxu0 0.0
    %273 = vmatpush1.msra.mxu0 %v246
    %274 = vmatprep.subr.mxu0 0.0
    %275 = vmatpush1.msra.mxu0 %v245
    %276 = vmatprep.subr.mxu0 0.0
    %277 = vmatpush1.msra.mxu0 %v244
    %278 = vmatprep.subr.mxu0 0.0
    %279 = vmatpush1.msra.mxu0 %v243
    %280 = vmatprep.subr.mxu0 0.0
    %281 = vmatpush1.msra.mxu0 %v242
    %282 = vmatprep.subr.mxu0 0.0
    %283 = vmatpush1.msra.mxu0 %v241
    %284 = vmatprep.subr.mxu0 0.0
    %285 = vmatpush1.msra.mxu0 %v240
    %286 = vmatprep.subr.mxu0 0.0
    %287 = vmatpush1.msra.mxu0 %v239
    %288 = vmatprep.subr.mxu0 0.0
    %289 = vmatpush1.msra.mxu0 %v238
    %290 = vmatprep.subr.mxu0 0.0
    %291 = vmatpush1.msra.mxu0 %v237
    %292 = vmatprep.subr.mxu0 0.0
    %293 = vmatpush2.msra.mxu0 0.0
    %294 = vmatprep.subr.mxu0 0.0
    %295 = vmatpush2.msra.mxu0 0.0
    %296 = vmatprep.subr.mxu0 0.0
    %297 = vmatpush2.msra.mxu0 0.0
    %298 = vmatprep.subr.mxu0 0.0
    %299 = vmatpush2.msra.mxu0 0.0
    %300 = vmatprep.subr.mxu0 0.0
    %301 = vmatpush2.msra.mxu0 0.0
    %302 = vmatprep.subr.mxu0 0.0
    %303 = vmatpush2.msra.mxu0 0.0
    %304 = vmatprep.subr.mxu0 0.0
    %305 = vmatpush2.msra.mxu0 0.0
    %306 = vmatprep.subr.mxu0 0.0
    %307 = vmatpush2.msra.mxu0 0.0
    %308 = vmatprep.subr.mxu0 0.0
    %309 = vmatpush2.msra.mxu0 0.0
    %310 = vmatprep.subr.mxu0 0.0
    %311 = vmatpush2.msra.mxu0 0.0
    %312 = vmatprep.subr.mxu0 0.0
    %313 = vmatpush2.msra.mxu0 0.0
    %314 = vmatprep.subr.mxu0 0.0
    %315 = vmatpush2.msra.mxu0 0.0
    %316 = vmatprep.subr.mxu0 0.0
    %317 = vmatpush2.msra.mxu0 0.0
    %318 = vmatprep.subr.mxu0 0.0
    %319 = vmatpush2.msra.mxu0 0.0
    %320 = vmatprep.subr.mxu0 0.0
    %321 = vmatpush2.msra.mxu0 0.0
    %322 = vmatprep.subr.mxu0 0.0
    %323 = vmatpush2.msra.mxu0 0.0
    %324 = vmatprep.mubr.f32.mxu0 0.0
    %325 = vmatmul.mubr.f32.gmra.mxu0 %v236
    %v326 = vpop.f32.mrf.mxu0
    %v327 = vadd.f32 %v258, %v326
    %v328 = vpop.f32.mrf.mxu0
    %329 = vdwg.mxu0
    %vm330 = vcmask 64512
    %331 = vst.msk [vmem:[%s7] sm:$0xff] %vm330, %v327
    // Predicated region
    $region38: #{neuralnet9_forward.1} parent=1 // pred_check
      _
    $region39: #{neuralnet9_forward.1} parent=1 // pred_check_branch
      %333 = sbr.rel (0) target = $region41
    $region40: #{neuralnet9_forward.1} parent=1 // pred_region
      _
    $region41: #{neuralnet9_forward.1} parent=1 // pred_fallthru
      _
    // Predicated region
    $region42: #{neuralnet9_forward.1} parent=1 // pred_check
      _
    $region43: #{neuralnet9_forward.1} parent=1 // pred_check_branch
      %335 = sbr.rel (0) target = $region45
    $region44: #{neuralnet9_forward.1} parent=1 // pred_region
      _
    $region45: #{neuralnet9_forward.1} parent=1 // pred_fallthru
      _
    %336 = vsyncpa [#allocation3], 1
    %337 = vsyncpa [#allocation5], 1

</llo_original>
